<compile_context>
chip_gen: v7x
topology: tpu7x:2x2x1
jax: 0.10.0
libtpu: 0.0.40
codegen_flags: <defaults>
</compile_context>

<pallas_src>
import functools

import jax
import jax.numpy as jnp
from jax.experimental import pallas as pl
from jax.experimental.pallas import tpu as pltpu


def _round_up(x: int, m: int) -> int:
    return (x + m - 1) // m * m


def _fused_mlp_kernel(*refs, num_layers: int):
    # refs = (x_ref, w_ref_0, ..., w_ref_{L-1}, o_ref)
    x_ref = refs[0]
    w_refs = refs[1:1 + num_layers]
    o_ref = refs[1 + num_layers]

    h = x_ref[...]                                  # [TB, D_in_p], compute dtype (bf16)
    for l in range(num_layers):
        y = jnp.dot(h, w_refs[l][...],              # MXU, f32 accumulation
                    preferred_element_type=jnp.float32)
        if l != num_layers - 1:
            h = jnp.maximum(y, 0.0).astype(x_ref.dtype)   # ReLU, back to bf16 for MXU
        else:
            h = y                                   # keep f32 for the final store
    o_ref[...] = h.astype(o_ref.dtype)              # lane-dense [TB, D_out_p] store


def fused_mlp(x, padded_weights, d_out, *, tile_batch: int = 512,
              compute_dtype=jnp.bfloat16):
    """Fused MLP forward.

    x:               [N, d_in] (any float dtype)
    padded_weights:  list of [D_in_p, D_out_p] arrays (feature dims padded to
                     multiples of 128, dtype == compute_dtype)
    d_out:           true (unpadded) output feature count
    returns          [N, d_out] float32
    """
    n, d_in = x.shape
    num_layers = len(padded_weights)
    d_in_p = padded_weights[0].shape[0]
    d_out_p = padded_weights[-1].shape[1]

    # Batch tiling: pad N so the grid is exact; padded rows are zeros and are
    # sliced off afterwards (zero rows stay zero through bias-free linears).
    sub = 16 if compute_dtype == jnp.bfloat16 else 8
    tb = min(tile_batch, _round_up(n, sub))
    tb = _round_up(tb, sub)
    n_pad = _round_up(n, tb)
    grid = (n_pad // tb,)

    # Pad / cast the input once at the kernel boundary.
    xp = jnp.zeros((n_pad, d_in_p), compute_dtype)
    xp = xp.at[:n, :d_in].set(x.astype(compute_dtype))

    # Advisory cost estimate for XLA scheduling around the custom call.
    flops = 0
    w_bytes = 0
    for w in padded_weights:
        flops += 2 * n_pad * w.shape[0] * w.shape[1]
        w_bytes += w.size * w.dtype.itemsize
    bytes_accessed = (xp.size * xp.dtype.itemsize
                      + w_bytes
                      + n_pad * d_out_p * 4)
    cost = pl.CostEstimate(flops=flops, transcendentals=0,
                           bytes_accessed=bytes_accessed)

    kernel = functools.partial(_fused_mlp_kernel, num_layers=num_layers)

    in_specs = [pl.BlockSpec((tb, d_in_p), lambda i: (i, 0))]
    for w in padded_weights:
        in_specs.append(pl.BlockSpec(w.shape, lambda i: (0, 0)))

    out = pl.pallas_call(
        kernel,
        out_shape=jax.ShapeDtypeStruct((n_pad, d_out_p), jnp.float32),
        grid_spec=pltpu.PrefetchScalarGridSpec(
            num_scalar_prefetch=0,
            grid=grid,
            in_specs=in_specs,
            out_specs=pl.BlockSpec((tb, d_out_p), lambda i: (i, 0)),
        ),
        compiler_params=pltpu.CompilerParams(
            dimension_semantics=("parallel",),
        ),
        cost_estimate=cost,
    )(xp, *padded_weights)

    return out[:n, :d_out]


class PallasMLP:
    """Mirror of the torch MLP module (bias-free Linear stack + interleaved ReLU).

    Weights are stored pre-transposed as [D_in, D_out] (== torch W.T), both in
    f32 (for the reference path) and zero-padded bf16 (for the fused kernel).
    """

    def __init__(self, dim_in, dim_out, dim_hidden, num_layers, key,
                 compute_dtype=jnp.bfloat16):
        self.dim_in = dim_in
        self.dim_out = dim_out
        self.dim_hidden = dim_hidden
        self.num_layers = num_layers
        self.compute_dtype = compute_dtype

        self.weights_f32 = []
        self.weights_padded = []
        for l in range(num_layers):
            d_i = dim_in if l == 0 else dim_hidden
            d_o = dim_out if l == num_layers - 1 else dim_hidden
            key, sub = jax.random.split(key)
            bound = 1.0 / jnp.sqrt(d_i)
            w = jax.random.uniform(sub, (d_i, d_o), dtype=jnp.float32,
                                   minval=-bound, maxval=bound)
            self.weights_f32.append(w)

            d_i_p = _round_up(d_i, 128)
            d_o_p = _round_up(d_o, 128)
            wp = jnp.zeros((d_i_p, d_o_p), compute_dtype)
            wp = wp.at[:d_i, :d_o].set(w.astype(compute_dtype))
            self.weights_padded.append(wp)

    def __call__(self, x, tile_batch: int = 512):
        return fused_mlp(x, self.weights_padded, self.dim_out,
                         tile_batch=tile_batch,
                         compute_dtype=self.compute_dtype)

    def reference_f32(self, x):
        h = x
        for l in range(self.num_layers):
            h = h @ self.weights_f32[l]
            if l != self.num_layers - 1:
                h = jnp.maximum(h, 0.0)
        return h

    def reference_lowp(self, x):
        # Same numerics as the kernel: bf16 operands, f32 accumulation.
        h = x.astype(self.compute_dtype)
        for l in range(self.num_layers):
            y = jnp.dot(h, self.weights_f32[l].astype(self.compute_dtype),
                        preferred_element_type=jnp.float32)
            if l != self.num_layers - 1:
                h = jnp.maximum(y, 0.0).astype(self.compute_dtype)
            else:
                h = y
        return h


if __name__ == "__main__":
    key = jax.random.PRNGKey(0)
    k_x, k_w = jax.random.split(key)

    batch = 128
    dim_in, dim_hidden, dim_out, num_layers = 16, 32, 8, 3

    x = jax.random.normal(k_x, (batch, dim_in), dtype=jnp.float32)

    mlp = PallasMLP(dim_in, dim_out, dim_hidden, num_layers, k_w)

    out = mlp(x)
    out = jax.block_until_ready(out)
    assert out.shape == (batch, dim_out)

    # Tight check against a reference with identical numerics (bf16 operands,
    # f32 accumulation) -- verifies the fusion / padding / tiling is exact.
    ref_lowp = mlp.reference_lowp(x)
    assert jnp.allclose(out, ref_lowp, atol=1e-3, rtol=1e-3), \
        "mismatch vs bf16-operand reference"

    # Loose sanity check against the pure-f32 reference (bf16 quantization only).
    ref_f32 = mlp.reference_f32(x)
    assert jnp.allclose(out, ref_f32, atol=1e-1, rtol=1e-1), \
        "mismatch vs f32 reference beyond bf16 tolerance"

    print("KERNEL_OK")
</pallas_src>

<mosaic_0001>
module attributes {stable_mosaic.version = 11 : i64} {
  func.func @_fused_mlp_kernel(%arg0: i32, %arg1: memref<128x128xbf16, #tpu.memory_space<vmem>>, %arg2: memref<128x128xbf16, #tpu.memory_space<vmem>>, %arg3: memref<128x128xbf16, #tpu.memory_space<vmem>>, %arg4: memref<128x128xbf16, #tpu.memory_space<vmem>>, %arg5: memref<128x128xf32, #tpu.memory_space<vmem>>) attributes {dimension_semantics = [#tpu.dimension_semantics<parallel>], iteration_bounds = array<i64: 1>, scalar_prefetch = 0 : i64, scratch_operands = 0 : i64, tpu.core_type = #tpu.core_type<tc>, window_params = [{transform_indices = @transform_0, window_bounds = array<i64: 128, 128>}, {pipeline_mode = #tpu.pipeline_mode<synchronous>, transform_indices = @transform_1, window_bounds = array<i64: 128, 128>}, {pipeline_mode = #tpu.pipeline_mode<synchronous>, transform_indices = @transform_2, window_bounds = array<i64: 128, 128>}, {pipeline_mode = #tpu.pipeline_mode<synchronous>, transform_indices = @transform_3, window_bounds = array<i64: 128, 128>}, {transform_indices = @transform_4, window_bounds = array<i64: 128, 128>}]} {
    %c0 = arith.constant 0 : index
    %c0_0 = arith.constant 0 : index
    %0 = vector.load %arg1[%c0, %c0_0] : memref<128x128xbf16, #tpu.memory_space<vmem>>, vector<128x128xbf16>
    %c0_1 = arith.constant 0 : index
    %c0_2 = arith.constant 0 : index
    %1 = vector.load %arg2[%c0_1, %c0_2] : memref<128x128xbf16, #tpu.memory_space<vmem>>, vector<128x128xbf16>
    %cst = arith.constant dense<0.000000e+00> : vector<128x128xf32>
    %2 = tpu.matmul %0, %1, %cst {dimension_numbers = #tpu.dot_dimension_numbers<[1], [0], [0], [1], [0, 0, 1, 1], [], []>} : vector<128x128xbf16>, vector<128x128xbf16>, vector<128x128xf32> -> vector<128x128xf32>
    %cst_3 = arith.constant 0.000000e+00 : f32
    %3 = vector.broadcast %cst_3 : f32 to vector<128x128xf32>
    %4 = arith.maximumf %2, %3 : vector<128x128xf32>
    %5 = arith.truncf %4 : vector<128x128xf32> to vector<128x128xbf16>
    %c0_4 = arith.constant 0 : index
    %c0_5 = arith.constant 0 : index
    %6 = vector.load %arg3[%c0_4, %c0_5] : memref<128x128xbf16, #tpu.memory_space<vmem>>, vector<128x128xbf16>
    %cst_6 = arith.constant dense<0.000000e+00> : vector<128x128xf32>
    %7 = tpu.matmul %5, %6, %cst_6 {dimension_numbers = #tpu.dot_dimension_numbers<[1], [0], [0], [1], [0, 0, 1, 1], [], []>} : vector<128x128xbf16>, vector<128x128xbf16>, vector<128x128xf32> -> vector<128x128xf32>
    %cst_7 = arith.constant 0.000000e+00 : f32
    %8 = vector.broadcast %cst_7 : f32 to vector<128x128xf32>
    %9 = arith.maximumf %7, %8 : vector<128x128xf32>
    %10 = arith.truncf %9 : vector<128x128xf32> to vector<128x128xbf16>
    %c0_8 = arith.constant 0 : index
    %c0_9 = arith.constant 0 : index
    %11 = vector.load %arg4[%c0_8, %c0_9] : memref<128x128xbf16, #tpu.memory_space<vmem>>, vector<128x128xbf16>
    %cst_10 = arith.constant dense<0.000000e+00> : vector<128x128xf32>
    %12 = tpu.matmul %10, %11, %cst_10 {dimension_numbers = #tpu.dot_dimension_numbers<[1], [0], [0], [1], [0, 0, 1, 1], [], []>} : vector<128x128xbf16>, vector<128x128xbf16>, vector<128x128xf32> -> vector<128x128xf32>
    %c0_11 = arith.constant 0 : index
    %c0_12 = arith.constant 0 : index
    %13 = vector.load %arg5[%c0_11, %c0_12] : memref<128x128xf32, #tpu.memory_space<vmem>>, vector<128x128xf32>
    tpu.vector_store %arg5[%c0_11, %c0_12], %12 {strides = array<i32>} : memref<128x128xf32, #tpu.memory_space<vmem>>, vector<128x128xf32>,
    return
  }
  func.func @transform_0(%arg0: i32) -> (i32, i32) {
    %c0_i32 = arith.constant 0 : i32
    %c0_i32_0 = arith.constant 0 : i32
    return %arg0, %c0_i32 : i32, i32
  }
  func.func @transform_1(%arg0: i32) -> (i32, i32) {
    %c0_i32 = arith.constant 0 : i32
    %c0_i32_0 = arith.constant 0 : i32
    %c0_i32_1 = arith.constant 0 : i32
    return %c0_i32, %c0_i32_0 : i32, i32
  }
  func.func @transform_2(%arg0: i32) -> (i32, i32) {
    %c0_i32 = arith.constant 0 : i32
    %c0_i32_0 = arith.constant 0 : i32
    %c0_i32_1 = arith.constant 0 : i32
    return %c0_i32, %c0_i32_0 : i32, i32
  }
  func.func @transform_3(%arg0: i32) -> (i32, i32) {
    %c0_i32 = arith.constant 0 : i32
    %c0_i32_0 = arith.constant 0 : i32
    %c0_i32_1 = arith.constant 0 : i32
    return %c0_i32, %c0_i32_0 : i32, i32
  }
  func.func @transform_4(%arg0: i32) -> (i32, i32) {
    %c0_i32 = arith.constant 0 : i32
    %c0_i32_0 = arith.constant 0 : i32
    return %arg0, %c0_i32 : i32, i32
  }
}

</mosaic_0001>

<llo_original>
// kernel: tpu_custom_call.1
$region0: #{tpu_custom_call.1}
  #allocation0 [shape = 'u32[]', space=smem, size = 0x4, offset = 0x4, fixed_abs, tag = 'smem constant byte address 0x4 - core index']
  #allocation1 [shape = 'u32[144,128]{1,0:T(1,128)}', space=vmem, size = 0x12000, scoped, tag = 'internal scratch']
  %s0 = inlined_call_operand.hbm [shape: bf16[128,128], index: 0, kind: input, shape index: {}]
  %s1 = inlined_call_operand.hbm [shape: bf16[128,128], index: 1, kind: input, shape index: {}]
  %s2 = inlined_call_operand.hbm [shape: bf16[128,128], index: 2, kind: input, shape index: {}]
  %s3 = inlined_call_operand.hbm [shape: bf16[128,128], index: 3, kind: input, shape index: {}]
  %s4 = inlined_call_operand.hbm [shape: f32[128,128], index: 4, kind: output, shape index: {}]
  %s5 = sld [smem:[#allocation0]]
  $region42: #{tpu_custom_call.1} parent=0
    _
  %s7 = ssub.s32 1, %s5
  %s8 = scalar_select 0, %s7, %s5
  $region1: #{tpu_custom_call.1} parent=0
    #allocation2 [shape = 'u8[32768]{0}', space=vmem, size = 0x8000, scoped, tag = 'input window, operand 0, single buffered']
    #allocation3 [shape = 's32[1]{0}', space=sflag, size = 0x4, scoped, tag = 'scoped memory for tpu_custom_call.1']
    #allocation4 [shape = 's32[1]{0}', space=sflag, size = 0x4, scoped, tag = 'scoped memory for tpu_custom_call.1']
    #allocation5 [shape = 'u8[32768]{0}', space=vmem, size = 0x8000, scoped, tag = 'input window, operand 1, single buffered']
    #allocation6 [shape = 's32[1]{0}', space=sflag, size = 0x4, scoped, tag = 'scoped memory for tpu_custom_call.1']
    #allocation7 [shape = 'u8[32768]{0}', space=vmem, size = 0x8000, scoped, tag = 'input window, operand 2, single buffered']
    #allocation8 [shape = 'u8[32768]{0}', space=vmem, size = 0x8000, scoped, tag = 'input window, operand 3, single buffered']
    #allocation9 [shape = 's32[1]{0}', space=sflag, size = 0x4, scoped, tag = 'scoped memory for tpu_custom_call.1']
    #allocation10 [shape = 'u8[65536]{0}', space=vmem, size = 0x10000, scoped, tag = 'output window, operand 0, single buffered']
    %9 = vsyncpa [#allocation3], 0
    %10 = vsyncpa [#allocation6], 0
    %11 = vsyncpa [#allocation9], 0
    %12 = vsyncpa [#allocation4], 0
    // Predicated region
    $region2: #{tpu_custom_call.1} parent=1 // pred_check
      _
    $region3: #{tpu_custom_call.1} parent=1 // pred_check_branch
      %14 = sbr.rel (0) target = $region5
    $region4: #{tpu_custom_call.1} parent=1 // pred_region
      %s16 = ssub.s32 1024, 1024
      %17 = vsyncadd [#allocation3], %s16
      %s18 = sshll.u32 [#allocation2], 4
      %s19 = int_to_ptr.vmem [resolvable:$true] %s18
      %24 = dma.hbm_to_vmem [thread:$0]  %s0, 1024, %s19, [#allocation3], 64, 64, 4
    $region5: #{tpu_custom_call.1} parent=1 // pred_fallthru
      _
    // Predicated region
    $region6: #{tpu_custom_call.1} parent=1 // pred_check
      _
    $region7: #{tpu_custom_call.1} parent=1 // pred_check_branch
      %26 = sbr.rel (0) target = $region9
    $region8: #{tpu_custom_call.1} parent=1 // pred_region
      %s28 = ssub.s32 1024, 1024
      %29 = vsyncadd [#allocation6], %s28
      %s30 = sshll.u32 [#allocation5], 4
      %s31 = int_to_ptr.vmem [resolvable:$true] %s30
      %36 = dma.hbm_to_vmem [thread:$0]  %s1, 1024, %s31, [#allocation6], 64, 64, 4
    $region9: #{tpu_custom_call.1} parent=1 // pred_fallthru
      _
    // Predicated region
    $region10: #{tpu_custom_call.1} parent=1 // pred_check
      _
    $region11: #{tpu_custom_call.1} parent=1 // pred_check_branch
      %38 = sbr.rel (0) target = $region13
    $region12: #{tpu_custom_call.1} parent=1 // pred_region
      %s40 = ssub.s32 1024, 1024
      %41 = vsyncadd [#allocation6], %s40
      %s42 = sshll.u32 [#allocation7], 4
      %s43 = int_to_ptr.vmem [resolvable:$true] %s42
      %48 = dma.hbm_to_vmem [thread:$0]  %s2, 1024, %s43, [#allocation6], 64, 64, 4
    $region13: #{tpu_custom_call.1} parent=1 // pred_fallthru
      _
    // Predicated region
    $region14: #{tpu_custom_call.1} parent=1 // pred_check
      _
    $region15: #{tpu_custom_call.1} parent=1 // pred_check_branch
      %50 = sbr.rel (0) target = $region17
    $region16: #{tpu_custom_call.1} parent=1 // pred_region
      %s52 = ssub.s32 1024, 1024
      %53 = vsyncadd [#allocation9], %s52
      %s54 = sshll.u32 [#allocation8], 4
      %s55 = int_to_ptr.vmem [resolvable:$true] %s54
      %60 = dma.hbm_to_vmem [thread:$0]  %s3, 1024, %s55, [#allocation9], 64, 64, 4
    $region17: #{tpu_custom_call.1} parent=1 // pred_fallthru
      _
    // Predicated region
    $region18: #{tpu_custom_call.1} parent=1 // pred_check
      _
    $region19: #{tpu_custom_call.1} parent=1 // pred_check_branch
      %62 = sbr.rel (0) target = $region21
    $region20: #{tpu_custom_call.1} parent=1 // pred_region
      %63 = dma.done [#allocation3], 1024
    $region21: #{tpu_custom_call.1} parent=1 // pred_fallthru
      _
    // Predicated region
    $region22: #{tpu_custom_call.1} parent=1 // pred_check
      _
    $region23: #{tpu_custom_call.1} parent=1 // pred_check_branch
      %65 = sbr.rel (0) target = $region25
    $region24: #{tpu_custom_call.1} parent=1 // pred_region
      %66 = dma.done [#allocation6], 1024
    $region25: #{tpu_custom_call.1} parent=1 // pred_fallthru
      _
    // Predicated region
    $region26: #{tpu_custom_call.1} parent=1 // pred_check
      _
    $region27: #{tpu_custom_call.1} parent=1 // pred_check_branch
      %68 = sbr.rel (0) target = $region29
    $region28: #{tpu_custom_call.1} parent=1 // pred_region
      %69 = dma.done [#allocation6], 1024
    $region29: #{tpu_custom_call.1} parent=1 // pred_fallthru
      _
    // Predicated region
    $region30: #{tpu_custom_call.1} parent=1 // pred_check
      _
    $region31: #{tpu_custom_call.1} parent=1 // pred_check_branch
      %71 = sbr.rel (0) target = $region33
    $region32: #{tpu_custom_call.1} parent=1 // pred_region
      %72 = dma.done [#allocation9], 1024
    $region33: #{tpu_custom_call.1} parent=1 // pred_fallthru
      _
    %v74 = vld [vmem:[#allocation2] sm:$0xf]
    %v75 = vld [vmem:[#allocation2 + $0x4] sm:$0xf]
    %v76 = vld [vmem:[#allocation2 + $0x8] sm:$0xf]
    %v77 = vld [vmem:[#allocation2 + $0xc] sm:$0xf]
    %v78 = vld [vmem:[#allocation2 + $0x10] sm:$0xf]
    %v79 = vld [vmem:[#allocation2 + $0x14] sm:$0xf]
    %v80 = vld [vmem:[#allocation2 + $0x18] sm:$0xf]
    %v81 = vld [vmem:[#allocation2 + $0x1c] sm:$0xf]
    %v82 = vld [vmem:[#allocation2 + $0x20] sm:$0xf]
    %v83 = vld [vmem:[#allocation2 + $0x24] sm:$0xf]
    %v84 = vld [vmem:[#allocation2 + $0x28] sm:$0xf]
    %v85 = vld [vmem:[#allocation2 + $0x2c] sm:$0xf]
    %v86 = vld [vmem:[#allocation2 + $0x30] sm:$0xf]
    %v87 = vld [vmem:[#allocation2 + $0x34] sm:$0xf]
    %v88 = vld [vmem:[#allocation2 + $0x38] sm:$0xf]
    %v89 = vld [vmem:[#allocation2 + $0x3c] sm:$0xf]
    %v90 = vld [vmem:[#allocation5] sm:$0xf]
    %v91 = vld [vmem:[#allocation5 + $0x4] sm:$0xf]
    %v92 = vld [vmem:[#allocation5 + $0x8] sm:$0xf]
    %v93 = vld [vmem:[#allocation5 + $0xc] sm:$0xf]
    %v94 = vld [vmem:[#allocation5 + $0x10] sm:$0xf]
    %v95 = vld [vmem:[#allocation5 + $0x14] sm:$0xf]
    %v96 = vld [vmem:[#allocation5 + $0x18] sm:$0xf]
    %v97 = vld [vmem:[#allocation5 + $0x1c] sm:$0xf]
    %v98 = vld [vmem:[#allocation5 + $0x20] sm:$0xf]
    %v99 = vld [vmem:[#allocation5 + $0x24] sm:$0xf]
    %v100 = vld [vmem:[#allocation5 + $0x28] sm:$0xf]
    %v101 = vld [vmem:[#allocation5 + $0x2c] sm:$0xf]
    %v102 = vld [vmem:[#allocation5 + $0x30] sm:$0xf]
    %v103 = vld [vmem:[#allocation5 + $0x34] sm:$0xf]
    %v104 = vld [vmem:[#allocation5 + $0x38] sm:$0xf]
    %v105 = vld [vmem:[#allocation5 + $0x3c] sm:$0xf]
    %v122 = vunpack.c.l.b16 %v74
    %v123 = vunpack.c.l.b16 %v75
    %v124 = vunpack.c.l.b16 %v76
    %v125 = vunpack.c.l.b16 %v77
    %v126 = vunpack.c.l.b16 %v78
    %v127 = vunpack.c.l.b16 %v79
    %v128 = vunpack.c.l.b16 %v80
    %v129 = vunpack.c.l.b16 %v81
    %v130 = vunpack.c.l.b16 %v82
    %v131 = vunpack.c.l.b16 %v83
    %v132 = vunpack.c.l.b16 %v84
    %v133 = vunpack.c.l.b16 %v85
    %v134 = vunpack.c.l.b16 %v86
    %v135 = vunpack.c.l.b16 %v87
    %v136 = vunpack.c.l.b16 %v88
    %v137 = vunpack.c.l.b16 %v89
    %v138 = vpack.c.b16 %v123, %v122
    %v139 = vpack.c.b16 %v125, %v124
    %v140 = vpack.c.b16 %v127, %v126
    %v141 = vpack.c.b16 %v129, %v128
    %v142 = vpack.c.b16 %v131, %v130
    %v143 = vpack.c.b16 %v133, %v132
    %v144 = vpack.c.b16 %v135, %v134
    %v145 = vpack.c.b16 %v137, %v136
    %v170 = vunpack.c.l.b16 %v90
    %v171 = vunpack.c.l.b16 %v91
    %v172 = vunpack.c.l.b16 %v92
    %v173 = vunpack.c.l.b16 %v93
    %v174 = vunpack.c.l.b16 %v94
    %v175 = vunpack.c.l.b16 %v95
    %v176 = vunpack.c.l.b16 %v96
    %v177 = vunpack.c.l.b16 %v97
    %v178 = vunpack.c.l.b16 %v98
    %v179 = vunpack.c.l.b16 %v99
    %v180 = vunpack.c.l.b16 %v100
    %v181 = vunpack.c.l.b16 %v101
    %v182 = vunpack.c.l.b16 %v102
    %v183 = vunpack.c.l.b16 %v103
    %v184 = vunpack.c.l.b16 %v104
    %v185 = vunpack.c.l.b16 %v105
    %v186 = vpack.c.b16 %v171, %v170
    %v187 = vpack.c.b16 %v173, %v172
    %v188 = vpack.c.b16 %v175, %v174
    %v189 = vpack.c.b16 %v177, %v176
    %v190 = vpack.c.b16 %v179, %v178
    %v191 = vpack.c.b16 %v181, %v180
    %v192 = vpack.c.b16 %v183, %v182
    %v193 = vpack.c.b16 %v185, %v184
    %202 = vmatprep.subr.bf16.mxu0 0
    %203 = vmatpush1.bf16.msra.mxu0 %v186
    %204 = vmatprep.subr.bf16.mxu0 0
    %205 = vmatpush1.bf16.msra.mxu0 %v187
    %206 = vmatprep.subr.bf16.mxu0 0
    %207 = vmatpush1.bf16.msra.mxu0 %v188
    %208 = vmatprep.subr.bf16.mxu0 0
    %209 = vmatpush1.bf16.msra.mxu0 %v189
    %210 = vmatprep.subr.bf16.mxu0 0
    %211 = vmatpush1.bf16.msra.mxu0 %v190
    %212 = vmatprep.subr.bf16.mxu0 0
    %213 = vmatpush1.bf16.msra.mxu0 %v191
    %214 = vmatprep.subr.bf16.mxu0 0
    %215 = vmatpush1.bf16.msra.mxu0 %v192
    %216 = vmatprep.subr.bf16.mxu0 0
    %217 = vmatpush1.bf16.msra.mxu0 %v193
    %218 = vmatprep.subr.bf16.mxu0 0
    %219 = vmatpush1.bf16.msra.mxu0 0
    %220 = vmatprep.subr.bf16.mxu0 0
    %221 = vmatpush1.bf16.msra.mxu0 0
    %222 = vmatprep.subr.bf16.mxu0 0
    %223 = vmatpush1.bf16.msra.mxu0 0
    %224 = vmatprep.subr.bf16.mxu0 0
    %225 = vmatpush1.bf16.msra.mxu0 0
    %226 = vmatprep.subr.bf16.mxu0 0
    %227 = vmatpush1.bf16.msra.mxu0 0
    %228 = vmatprep.subr.bf16.mxu0 0
    %229 = vmatpush1.bf16.msra.mxu0 0
    %230 = vmatprep.subr.bf16.mxu0 0
    %231 = vmatpush1.bf16.msra.mxu0 0
    %232 = vmatprep.subr.bf16.mxu0 0
    %233 = vmatpush1.bf16.msra.mxu0 0
    %234 = vmatprep.mubr.bf16.mxu0 0
    %235 = vmatmul.mubr.bf16.gmra.mrb[0].mxu0 %v138
    %v236 = vpop.f32.mrb[0].mxu0
    %v237 = vadd.f32 0.0, %v236
    %v238 = vpop.f32.mrb[0].mxu0
    %v239 = vpop.f32.mrb[0].mxu0
    %v240 = vadd.f32 0.0, %v239
    %v241 = vpop.f32.mrb[0].mxu0
    %242 = vmatprep.mubr.bf16.mxu0 0
    %243 = vmatmul.mubr.bf16.gmra.mrb[0].mxu0 %v139
    %v244 = vpop.f32.mrb[0].mxu0
    %v245 = vadd.f32 0.0, %v244
    %v246 = vpop.f32.mrb[0].mxu0
    %v247 = vpop.f32.mrb[0].mxu0
    %v248 = vadd.f32 0.0, %v247
    %v249 = vpop.f32.mrb[0].mxu0
    %250 = vmatprep.mubr.bf16.mxu0 0
    %251 = vmatmul.mubr.bf16.gmra.mrb[0].mxu0 %v140
    %v252 = vpop.f32.mrb[0].mxu0
    %v253 = vadd.f32 0.0, %v252
    %v254 = vpop.f32.mrb[0].mxu0
    %v255 = vpop.f32.mrb[0].mxu0
    %v256 = vadd.f32 0.0, %v255
    %v257 = vpop.f32.mrb[0].mxu0
    %258 = vmatprep.mubr.bf16.mxu0 0
    %259 = vmatmul.mubr.bf16.gmra.mrb[0].mxu0 %v141
    %v260 = vpop.f32.mrb[0].mxu0
    %v261 = vadd.f32 0.0, %v260
    %v262 = vpop.f32.mrb[0].mxu0
    %v263 = vpop.f32.mrb[0].mxu0
    %v264 = vadd.f32 0.0, %v263
    %v265 = vpop.f32.mrb[0].mxu0
    %266 = vmatprep.mubr.bf16.mxu0 0
    %267 = vmatmul.mubr.bf16.gmra.mrb[0].mxu0 %v142
    %v268 = vpop.f32.mrb[0].mxu0
    %v269 = vadd.f32 0.0, %v268
    %v270 = vpop.f32.mrb[0].mxu0
    %v271 = vpop.f32.mrb[0].mxu0
    %v272 = vadd.f32 0.0, %v271
    %v273 = vpop.f32.mrb[0].mxu0
    %274 = vmatprep.mubr.bf16.mxu0 0
    %275 = vmatmul.mubr.bf16.gmra.mrb[0].mxu0 %v143
    %v276 = vpop.f32.mrb[0].mxu0
    %v277 = vadd.f32 0.0, %v276
    %v278 = vpop.f32.mrb[0].mxu0
    %v279 = vpop.f32.mrb[0].mxu0
    %v280 = vadd.f32 0.0, %v279
    %v281 = vpop.f32.mrb[0].mxu0
    %282 = vmatprep.mubr.bf16.mxu0 0
    %283 = vmatmul.mubr.bf16.gmra.mrb[0].mxu0 %v144
    %v284 = vpop.f32.mrb[0].mxu0
    %v285 = vadd.f32 0.0, %v284
    %v286 = vpop.f32.mrb[0].mxu0
    %v287 = vpop.f32.mrb[0].mxu0
    %v288 = vadd.f32 0.0, %v287
    %v289 = vpop.f32.mrb[0].mxu0
    %290 = vmatprep.mubr.bf16.mxu0 0
    %291 = vmatmul.mubr.bf16.gmra.mrb[0].mxu0 %v145
    %v292 = vpop.f32.mrb[0].mxu0
    %v293 = vadd.f32 0.0, %v292
    %v294 = vpop.f32.mrb[0].mxu0
    %v295 = vpop.f32.mrb[0].mxu0
    %v296 = vadd.f32 0.0, %v295
    %v297 = vpop.f32.mrb[0].mxu0
    %298 = vdwg.mxu0
    %v299 = vmax.f32 %v237, 0.0
    %v300 = vmax.f32 %v240, 0.0
    %v301 = vmax.f32 %v245, 0.0
    %v302 = vmax.f32 %v248, 0.0
    %v303 = vmax.f32 %v253, 0.0
    %v304 = vmax.f32 %v256, 0.0
    %v305 = vmax.f32 %v261, 0.0
    %v306 = vmax.f32 %v264, 0.0
    %v307 = vmax.f32 %v269, 0.0
    %v308 = vmax.f32 %v272, 0.0
    %v309 = vmax.f32 %v277, 0.0
    %v310 = vmax.f32 %v280, 0.0
    %v311 = vmax.f32 %v285, 0.0
    %v312 = vmax.f32 %v288, 0.0
    %v313 = vmax.f32 %v293, 0.0
    %v314 = vmax.f32 %v296, 0.0
    %v315 = vpack.c.bf16 %v300, %v299
    %v316 = vpack.c.bf16 %v302, %v301
    %v317 = vpack.c.bf16 %v304, %v303
    %v318 = vpack.c.bf16 %v306, %v305
    %v319 = vpack.c.bf16 %v308, %v307
    %v320 = vpack.c.bf16 %v310, %v309
    %v321 = vpack.c.bf16 %v312, %v311
    %v322 = vpack.c.bf16 %v314, %v313
    %v323 = vld [vmem:[#allocation7] sm:$0xf]
    %v324 = vld [vmem:[#allocation7 + $0x4] sm:$0xf]
    %v325 = vld [vmem:[#allocation7 + $0x8] sm:$0xf]
    %v326 = vld [vmem:[#allocation7 + $0xc] sm:$0xf]
    %v327 = vld [vmem:[#allocation7 + $0x10] sm:$0xf]
    %v328 = vld [vmem:[#allocation7 + $0x14] sm:$0xf]
    %v329 = vld [vmem:[#allocation7 + $0x18] sm:$0xf]
    %v330 = vld [vmem:[#allocation7 + $0x1c] sm:$0xf]
    %v331 = vld [vmem:[#allocation7 + $0x20] sm:$0xf]
    %v332 = vld [vmem:[#allocation7 + $0x24] sm:$0xf]
    %v333 = vld [vmem:[#allocation7 + $0x28] sm:$0xf]
    %v334 = vld [vmem:[#allocation7 + $0x2c] sm:$0xf]
    %v335 = vld [vmem:[#allocation7 + $0x30] sm:$0xf]
    %v336 = vld [vmem:[#allocation7 + $0x34] sm:$0xf]
    %v337 = vld [vmem:[#allocation7 + $0x38] sm:$0xf]
    %v338 = vld [vmem:[#allocation7 + $0x3c] sm:$0xf]
    %v355 = vunpack.c.l.b16 %v323
    %v356 = vunpack.c.l.b16 %v324
    %v357 = vunpack.c.l.b16 %v325
    %v358 = vunpack.c.l.b16 %v326
    %v359 = vunpack.c.l.b16 %v327
    %v360 = vunpack.c.l.b16 %v328
    %v361 = vunpack.c.l.b16 %v329
    %v362 = vunpack.c.l.b16 %v330
    %v363 = vunpack.c.l.b16 %v331
    %v364 = vunpack.c.l.b16 %v332
    %v365 = vunpack.c.l.b16 %v333
    %v366 = vunpack.c.l.b16 %v334
    %v367 = vunpack.c.l.b16 %v335
    %v368 = vunpack.c.l.b16 %v336
    %v369 = vunpack.c.l.b16 %v337
    %v370 = vunpack.c.l.b16 %v338
    %v371 = vpack.c.b16 %v356, %v355
    %v372 = vpack.c.b16 %v358, %v357
    %v373 = vpack.c.b16 %v360, %v359
    %v374 = vpack.c.b16 %v362, %v361
    %v375 = vpack.c.b16 %v364, %v363
    %v376 = vpack.c.b16 %v366, %v365
    %v377 = vpack.c.b16 %v368, %v367
    %v378 = vpack.c.b16 %v370, %v369
    %387 = vmatprep.subr.bf16.mxu0 0
    %388 = vmatpush1.bf16.msra.mxu0 %v371
    %389 = vmatprep.subr.bf16.mxu0 0
    %390 = vmatpush1.bf16.msra.mxu0 %v372
    %391 = vmatprep.subr.bf16.mxu0 0
    %392 = vmatpush1.bf16.msra.mxu0 %v373
    %393 = vmatprep.subr.bf16.mxu0 0
    %394 = vmatpush1.bf16.msra.mxu0 %v374
    %395 = vmatprep.subr.bf16.mxu0 0
    %396 = vmatpush1.bf16.msra.mxu0 %v375
    %397 = vmatprep.subr.bf16.mxu0 0
    %398 = vmatpush1.bf16.msra.mxu0 %v376
    %399 = vmatprep.subr.bf16.mxu0 0
    %400 = vmatpush1.bf16.msra.mxu0 %v377
    %401 = vmatprep.subr.bf16.mxu0 0
    %402 = vmatpush1.bf16.msra.mxu0 %v378
    %403 = vmatprep.subr.bf16.mxu0 0
    %404 = vmatpush1.bf16.msra.mxu0 0
    %405 = vmatprep.subr.bf16.mxu0 0
    %406 = vmatpush1.bf16.msra.mxu0 0
    %407 = vmatprep.subr.bf16.mxu0 0
    %408 = vmatpush1.bf16.msra.mxu0 0
    %409 = vmatprep.subr.bf16.mxu0 0
    %410 = vmatpush1.bf16.msra.mxu0 0
    %411 = vmatprep.subr.bf16.mxu0 0
    %412 = vmatpush1.bf16.msra.mxu0 0
    %413 = vmatprep.subr.bf16.mxu0 0
    %414 = vmatpush1.bf16.msra.mxu0 0
    %415 = vmatprep.subr.bf16.mxu0 0
    %416 = vmatpush1.bf16.msra.mxu0 0
    %417 = vmatprep.subr.bf16.mxu0 0
    %418 = vmatpush1.bf16.msra.mxu0 0
    %419 = vmatprep.mubr.bf16.mxu0 0
    %420 = vmatmul.mubr.bf16.gmra.mrb[0].mxu0 %v315
    %v421 = vpop.f32.mrb[0].mxu0
    %v422 = vadd.f32 0.0, %v421
    %v423 = vpop.f32.mrb[0].mxu0
    %v424 = vpop.f32.mrb[0].mxu0
    %v425 = vadd.f32 0.0, %v424
    %v426 = vpop.f32.mrb[0].mxu0
    %427 = vmatprep.mubr.bf16.mxu0 0
    %428 = vmatmul.mubr.bf16.gmra.mrb[0].mxu0 %v316
    %v429 = vpop.f32.mrb[0].mxu0
    %v430 = vadd.f32 0.0, %v429
    %v431 = vpop.f32.mrb[0].mxu0
    %v432 = vpop.f32.mrb[0].mxu0
    %v433 = vadd.f32 0.0, %v432
    %v434 = vpop.f32.mrb[0].mxu0
    %435 = vmatprep.mubr.bf16.mxu0 0
    %436 = vmatmul.mubr.bf16.gmra.mrb[0].mxu0 %v317
    %v437 = vpop.f32.mrb[0].mxu0
    %v438 = vadd.f32 0.0, %v437
    %v439 = vpop.f32.mrb[0].mxu0
    %v440 = vpop.f32.mrb[0].mxu0
    %v441 = vadd.f32 0.0, %v440
    %v442 = vpop.f32.mrb[0].mxu0
    %443 = vmatprep.mubr.bf16.mxu0 0
    %444 = vmatmul.mubr.bf16.gmra.mrb[0].mxu0 %v318
    %v445 = vpop.f32.mrb[0].mxu0
    %v446 = vadd.f32 0.0, %v445
    %v447 = vpop.f32.mrb[0].mxu0
    %v448 = vpop.f32.mrb[0].mxu0
    %v449 = vadd.f32 0.0, %v448
    %v450 = vpop.f32.mrb[0].mxu0
    %451 = vmatprep.mubr.bf16.mxu0 0
    %452 = vmatmul.mubr.bf16.gmra.mrb[0].mxu0 %v319
    %v453 = vpop.f32.mrb[0].mxu0
    %v454 = vadd.f32 0.0, %v453
    %v455 = vpop.f32.mrb[0].mxu0
    %v456 = vpop.f32.mrb[0].mxu0
    %v457 = vadd.f32 0.0, %v456
    %v458 = vpop.f32.mrb[0].mxu0
    %459 = vmatprep.mubr.bf16.mxu0 0
    %460 = vmatmul.mubr.bf16.gmra.mrb[0].mxu0 %v320
    %v461 = vpop.f32.mrb[0].mxu0
    %v462 = vadd.f32 0.0, %v461
    %v463 = vpop.f32.mrb[0].mxu0
    %v464 = vpop.f32.mrb[0].mxu0
    %v465 = vadd.f32 0.0, %v464
    %v466 = vpop.f32.mrb[0].mxu0
    %467 = vmatprep.mubr.bf16.mxu0 0
    %468 = vmatmul.mubr.bf16.gmra.mrb[0].mxu0 %v321
    %v469 = vpop.f32.mrb[0].mxu0
    %v470 = vadd.f32 0.0, %v469
    %v471 = vpop.f32.mrb[0].mxu0
    %v472 = vpop.f32.mrb[0].mxu0
    %v473 = vadd.f32 0.0, %v472
    %v474 = vpop.f32.mrb[0].mxu0
    %475 = vmatprep.mubr.bf16.mxu0 0
    %476 = vmatmul.mubr.bf16.gmra.mrb[0].mxu0 %v322
    %v477 = vpop.f32.mrb[0].mxu0
    %v478 = vadd.f32 0.0, %v477
    %v479 = vpop.f32.mrb[0].mxu0
    %v480 = vpop.f32.mrb[0].mxu0
    %v481 = vadd.f32 0.0, %v480
    %v482 = vpop.f32.mrb[0].mxu0
    %483 = vdwg.mxu0
    %v484 = vmax.f32 %v422, 0.0
    %v485 = vmax.f32 %v425, 0.0
    %v486 = vmax.f32 %v430, 0.0
    %v487 = vmax.f32 %v433, 0.0
    %v488 = vmax.f32 %v438, 0.0
    %v489 = vmax.f32 %v441, 0.0
    %v490 = vmax.f32 %v446, 0.0
    %v491 = vmax.f32 %v449, 0.0
    %v492 = vmax.f32 %v454, 0.0
    %v493 = vmax.f32 %v457, 0.0
    %v494 = vmax.f32 %v462, 0.0
    %v495 = vmax.f32 %v465, 0.0
    %v496 = vmax.f32 %v470, 0.0
    %v497 = vmax.f32 %v473, 0.0
    %v498 = vmax.f32 %v478, 0.0
    %v499 = vmax.f32 %v481, 0.0
    %v500 = vpack.c.bf16 %v485, %v484
    %v501 = vpack.c.bf16 %v487, %v486
    %v502 = vpack.c.bf16 %v489, %v488
    %v503 = vpack.c.bf16 %v491, %v490
    %v504 = vpack.c.bf16 %v493, %v492
    %v505 = vpack.c.bf16 %v495, %v494
    %v506 = vpack.c.bf16 %v497, %v496
    %v507 = vpack.c.bf16 %v499, %v498
    %v508 = vld [vmem:[#allocation8] sm:$0xf]
    %v509 = vld [vmem:[#allocation8 + $0x4] sm:$0xf]
    %v510 = vld [vmem:[#allocation8 + $0x8] sm:$0xf]
    %v511 = vld [vmem:[#allocation8 + $0xc] sm:$0xf]
    %v512 = vld [vmem:[#allocation8 + $0x10] sm:$0xf]
    %v513 = vld [vmem:[#allocation8 + $0x14] sm:$0xf]
    %v514 = vld [vmem:[#allocation8 + $0x18] sm:$0xf]
    %v515 = vld [vmem:[#allocation8 + $0x1c] sm:$0xf]
    %v516 = vld [vmem:[#allocation8 + $0x20] sm:$0xf]
    %v517 = vld [vmem:[#allocation8 + $0x24] sm:$0xf]
    %v518 = vld [vmem:[#allocation8 + $0x28] sm:$0xf]
    %v519 = vld [vmem:[#allocation8 + $0x2c] sm:$0xf]
    %v520 = vld [vmem:[#allocation8 + $0x30] sm:$0xf]
    %v521 = vld [vmem:[#allocation8 + $0x34] sm:$0xf]
    %v522 = vld [vmem:[#allocation8 + $0x38] sm:$0xf]
    %v523 = vld [vmem:[#allocation8 + $0x3c] sm:$0xf]
    %v540 = vunpack.c.l.b16 %v508
    %v541 = vunpack.c.l.b16 %v509
    %v542 = vunpack.c.l.b16 %v510
    %v543 = vunpack.c.l.b16 %v511
    %v544 = vunpack.c.l.b16 %v512
    %v545 = vunpack.c.l.b16 %v513
    %v546 = vunpack.c.l.b16 %v514
    %v547 = vunpack.c.l.b16 %v515
    %v548 = vunpack.c.l.b16 %v516
    %v549 = vunpack.c.l.b16 %v517
    %v550 = vunpack.c.l.b16 %v518
    %v551 = vunpack.c.l.b16 %v519
    %v552 = vunpack.c.l.b16 %v520
    %v553 = vunpack.c.l.b16 %v521
    %v554 = vunpack.c.l.b16 %v522
    %v555 = vunpack.c.l.b16 %v523
    %v556 = vpack.c.b16 %v541, %v540
    %v557 = vpack.c.b16 %v543, %v542
    %v558 = vpack.c.b16 %v545, %v544
    %v559 = vpack.c.b16 %v547, %v546
    %v560 = vpack.c.b16 %v549, %v548
    %v561 = vpack.c.b16 %v551, %v550
    %v562 = vpack.c.b16 %v553, %v552
    %v563 = vpack.c.b16 %v555, %v554
    %572 = vmatprep.subr.bf16.mxu0 0
    %573 = vmatpush1.bf16.msra.mxu0 %v556
    %574 = vmatprep.subr.bf16.mxu0 0
    %575 = vmatpush1.bf16.msra.mxu0 %v557
    %576 = vmatprep.subr.bf16.mxu0 0
    %577 = vmatpush1.bf16.msra.mxu0 %v558
    %578 = vmatprep.subr.bf16.mxu0 0
    %579 = vmatpush1.bf16.msra.mxu0 %v559
    %580 = vmatprep.subr.bf16.mxu0 0
    %581 = vmatpush1.bf16.msra.mxu0 %v560
    %582 = vmatprep.subr.bf16.mxu0 0
    %583 = vmatpush1.bf16.msra.mxu0 %v561
    %584 = vmatprep.subr.bf16.mxu0 0
    %585 = vmatpush1.bf16.msra.mxu0 %v562
    %586 = vmatprep.subr.bf16.mxu0 0
    %587 = vmatpush1.bf16.msra.mxu0 %v563
    %588 = vmatprep.subr.bf16.mxu0 0
    %589 = vmatpush1.bf16.msra.mxu0 0
    %590 = vmatprep.subr.bf16.mxu0 0
    %591 = vmatpush1.bf16.msra.mxu0 0
    %592 = vmatprep.subr.bf16.mxu0 0
    %593 = vmatpush1.bf16.msra.mxu0 0
    %594 = vmatprep.subr.bf16.mxu0 0
    %595 = vmatpush1.bf16.msra.mxu0 0
    %596 = vmatprep.subr.bf16.mxu0 0
    %597 = vmatpush1.bf16.msra.mxu0 0
    %598 = vmatprep.subr.bf16.mxu0 0
    %599 = vmatpush1.bf16.msra.mxu0 0
    %600 = vmatprep.subr.bf16.mxu0 0
    %601 = vmatpush1.bf16.msra.mxu0 0
    %602 = vmatprep.subr.bf16.mxu0 0
    %603 = vmatpush1.bf16.msra.mxu0 0
    %604 = vmatprep.mubr.bf16.mxu0 0
    %605 = vmatmul.mubr.bf16.gmra.mrb[0].mxu0 %v500
    %v606 = vpop.f32.mrb[0].mxu0
    %v607 = vadd.f32 0.0, %v606
    %v608 = vpop.f32.mrb[0].mxu0
    %v609 = vpop.f32.mrb[0].mxu0
    %v610 = vadd.f32 0.0, %v609
    %v611 = vpop.f32.mrb[0].mxu0
    %612 = vmatprep.mubr.bf16.mxu0 0
    %613 = vmatmul.mubr.bf16.gmra.mrb[0].mxu0 %v501
    %v614 = vpop.f32.mrb[0].mxu0
    %v615 = vadd.f32 0.0, %v614
    %v616 = vpop.f32.mrb[0].mxu0
    %v617 = vpop.f32.mrb[0].mxu0
    %v618 = vadd.f32 0.0, %v617
    %v619 = vpop.f32.mrb[0].mxu0
    %620 = vmatprep.mubr.bf16.mxu0 0
    %621 = vmatmul.mubr.bf16.gmra.mrb[0].mxu0 %v502
    %v622 = vpop.f32.mrb[0].mxu0
    %v623 = vadd.f32 0.0, %v622
    %v624 = vpop.f32.mrb[0].mxu0
    %v625 = vpop.f32.mrb[0].mxu0
    %v626 = vadd.f32 0.0, %v625
    %v627 = vpop.f32.mrb[0].mxu0
    %628 = vmatprep.mubr.bf16.mxu0 0
    %629 = vmatmul.mubr.bf16.gmra.mrb[0].mxu0 %v503
    %v630 = vpop.f32.mrb[0].mxu0
    %v631 = vadd.f32 0.0, %v630
    %v632 = vpop.f32.mrb[0].mxu0
    %v633 = vpop.f32.mrb[0].mxu0
    %v634 = vadd.f32 0.0, %v633
    %v635 = vpop.f32.mrb[0].mxu0
    %636 = vmatprep.mubr.bf16.mxu0 0
    %637 = vmatmul.mubr.bf16.gmra.mrb[0].mxu0 %v504
    %v638 = vpop.f32.mrb[0].mxu0
    %v639 = vadd.f32 0.0, %v638
    %v640 = vpop.f32.mrb[0].mxu0
    %v641 = vpop.f32.mrb[0].mxu0
    %v642 = vadd.f32 0.0, %v641
    %v643 = vpop.f32.mrb[0].mxu0
    %644 = vmatprep.mubr.bf16.mxu0 0
    %645 = vmatmul.mubr.bf16.gmra.mrb[0].mxu0 %v505
    %v646 = vpop.f32.mrb[0].mxu0
    %v647 = vadd.f32 0.0, %v646
    %v648 = vpop.f32.mrb[0].mxu0
    %v649 = vpop.f32.mrb[0].mxu0
    %v650 = vadd.f32 0.0, %v649
    %v651 = vpop.f32.mrb[0].mxu0
    %652 = vmatprep.mubr.bf16.mxu0 0
    %653 = vmatmul.mubr.bf16.gmra.mrb[0].mxu0 %v506
    %v654 = vpop.f32.mrb[0].mxu0
    %v655 = vadd.f32 0.0, %v654
    %v656 = vpop.f32.mrb[0].mxu0
    %v657 = vpop.f32.mrb[0].mxu0
    %v658 = vadd.f32 0.0, %v657
    %v659 = vpop.f32.mrb[0].mxu0
    %660 = vmatprep.mubr.bf16.mxu0 0
    %661 = vmatmul.mubr.bf16.gmra.mrb[0].mxu0 %v507
    %v662 = vpop.f32.mrb[0].mxu0
    %v663 = vadd.f32 0.0, %v662
    %v664 = vpop.f32.mrb[0].mxu0
    %v665 = vpop.f32.mrb[0].mxu0
    %v666 = vadd.f32 0.0, %v665
    %v667 = vpop.f32.mrb[0].mxu0
    %668 = vdwg.mxu0
    %669 = vst [vmem:[#allocation10] sm:$0xff] %v607
    %670 = vst [vmem:[#allocation10 + $0x8] sm:$0xff] %v610
    %671 = vst [vmem:[#allocation10 + $0x10] sm:$0xff] %v615
    %672 = vst [vmem:[#allocation10 + $0x18] sm:$0xff] %v618
    %673 = vst [vmem:[#allocation10 + $0x20] sm:$0xff] %v623
    %674 = vst [vmem:[#allocation10 + $0x28] sm:$0xff] %v626
    %675 = vst [vmem:[#allocation10 + $0x30] sm:$0xff] %v631
    %676 = vst [vmem:[#allocation10 + $0x38] sm:$0xff] %v634
    %677 = vst [vmem:[#allocation10 + $0x40] sm:$0xff] %v639
    %678 = vst [vmem:[#allocation10 + $0x48] sm:$0xff] %v642
    %679 = vst [vmem:[#allocation10 + $0x50] sm:$0xff] %v647
    %680 = vst [vmem:[#allocation10 + $0x58] sm:$0xff] %v650
    %681 = vst [vmem:[#allocation10 + $0x60] sm:$0xff] %v655
    %682 = vst [vmem:[#allocation10 + $0x68] sm:$0xff] %v658
    %683 = vst [vmem:[#allocation10 + $0x70] sm:$0xff] %v663
    %684 = vst [vmem:[#allocation10 + $0x78] sm:$0xff] %v666
    // Predicated region
    $region34: #{tpu_custom_call.1} parent=1 // pred_check
      _
    $region35: #{tpu_custom_call.1} parent=1 // pred_check_branch
      %686 = sbr.rel (0) target = $region37
    $region36: #{tpu_custom_call.1} parent=1 // pred_region
      %s688 = ssub.s32 2048, 2048
      %689 = vsyncadd [#allocation4], %s688
      %s690 = sshll.u32 [#allocation10], 4
      %s691 = int_to_ptr.vmem [resolvable:$true] %s690
      %696 = dma.vmem_to_hbm [thread:$0]  %s691, 2048, %s4, [#allocation4], 128, 128, 8
    $region37: #{tpu_custom_call.1} parent=1 // pred_fallthru
      _
    // Predicated region
    $region38: #{tpu_custom_call.1} parent=1 // pred_check
      _
    $region39: #{tpu_custom_call.1} parent=1 // pred_check_branch
      %698 = sbr.rel (0) target = $region41
    $region40: #{tpu_custom_call.1} parent=1 // pred_region
      %699 = dma.done [#allocation4], 2048
    $region41: #{tpu_custom_call.1} parent=1 // pred_fallthru
      _
    %700 = vsyncpa [#allocation3], 1
    %701 = vsyncpa [#allocation6], 1
    %702 = vsyncpa [#allocation9], 1
    %703 = vsyncpa [#allocation4], 1

</llo_original>
